<compile_context>
chip_gen: v7x
topology: tpu7x:2x2x1
jax: 0.10.0
libtpu: 0.0.40
codegen_flags: <defaults>
</compile_context>

<pallas_src>
import functools

import jax
import jax.numpy as jnp
from jax import lax
from jax.experimental import pallas as pl
from jax.experimental.pallas import tpu as pltpu

DROPOUT_RATE = 0.0                                     # Dropout(0.0) == identity
_NEG_INF = -0.7 * float(jnp.finfo(jnp.float32).max)    # finite "-inf" (no NaN risk)
_MASK_BIAS = -1e30                                     # additive pad-column bias


def _round_up(x, m):
    return (x + m - 1) // m * m


def _cdiv(a, b):
    return (a + b - 1) // b


def _flash_sdpa_kernel(q_ref, k_ref, v_ref, bias_ref, o_ref,
                       qs_sc, m_sc, l_sc, acc_sc, *, scale, apply_bias):
    """One (b, q_tile, k_tile) grid step of flash attention (online softmax)."""
    j = pl.program_id(2)          # Lk (reduction) axis — last grid axis

    @pl.when(j == 0)
    def _init():
        # The q tile is resident across the whole Lk axis (index_map ignores j):
        # scale and cast it to bf16 ONCE instead of on every k step.
        qs_sc[...] = (q_ref[...].astype(jnp.float32) * scale).astype(jnp.bfloat16)
        m_sc[...] = jnp.full_like(m_sc, _NEG_INF)
        l_sc[...] = jnp.zeros_like(l_sc)
        acc_sc[...] = jnp.zeros_like(acc_sc)

    # scores: (tq, D) x (tk, D)^T, bf16 operands, f32 accumulation on the MXU.
    s = lax.dot_general(qs_sc[...], k_ref[...].astype(jnp.bfloat16),
                        (((1,), (1,)), ((), ())),
                        preferred_element_type=jnp.float32)        # (tq, tk)

    if apply_bias:   # static: only emitted when Lk was padded up to a tile
        s = s + bias_ref[...]        # (1, tk) broadcast add: 0 valid, -1e30 pad

    # online softmax update
    m_prev = m_sc[...]                                             # (tq, 1)
    m_new = jnp.maximum(m_prev, jnp.max(s, axis=-1, keepdims=True))
    alpha = jnp.exp(m_prev - m_new)                                # (tq, 1)
    p = jnp.exp(s - m_new)                                         # (tq, tk) f32
    l_sc[...] = alpha * l_sc[...] + jnp.sum(p, axis=-1, keepdims=True)
    acc_sc[...] = alpha * acc_sc[...] + jnp.dot(
        p.astype(jnp.bfloat16), v_ref[...].astype(jnp.bfloat16),
        preferred_element_type=jnp.float32)                        # (tq, D)
    m_sc[...] = m_new

    @pl.when(j == pl.num_programs(2) - 1)
    def _finalize():
        inv_l = pl.reciprocal(l_sc[...], approx=True)              # EUP slot
        o_ref[...] = (acc_sc[...] * inv_l).astype(o_ref.dtype)


def scaled_dot_product_attention(query, key, value, mask=None, *,
                                 block_q=512, block_k=1024):
    """softmax(q @ k^T / sqrt(D)) @ v   (mask accepted but unused, like the ref)."""
    del mask  # accepted but unused, exactly like the PyTorch module's forward
    B, Lq, D = query.shape
    _, Lk, _ = key.shape
    scale = float(D) ** -0.5

    # ---- tile selection -----------------------------------------------------
    tq = min(_round_up(block_q, 8), _round_up(Lq, 8))
    # v7x has 2 TensorCores: keep the product of the "parallel" grid axes >= 2
    # whenever the q axis is long enough to split.
    if B * _cdiv(_round_up(Lq, 8), tq) < 2 and Lq >= 16:
        tq = _round_up(_cdiv(Lq, 2), 8)
    tk = min(_round_up(block_k, 8), _round_up(Lk, 8))
    Lq_p = _round_up(Lq, tq)
    Lk_p = _round_up(Lk, tk)

    # ---- (minimal) wrapper-side padding -------------------------------------
    qp = query if Lq_p == Lq else jnp.pad(query, ((0, 0), (0, Lq_p - Lq), (0, 0)))
    if Lk_p == Lk:
        kp, vp = key, value
    else:
        kp = jnp.pad(key, ((0, 0), (0, Lk_p - Lk), (0, 0)))
        vp = jnp.pad(value, ((0, 0), (0, Lk_p - Lk), (0, 0)))

    apply_bias = Lk_p != Lk
    col = jnp.arange(Lk_p, dtype=jnp.int32)[None, :]
    bias = jnp.where(col < Lk, 0.0, _MASK_BIAS).astype(jnp.float32)   # (1, Lk_p)

    grid = (B, Lq_p // tq, Lk_p // tk)

    # ---- VMEM budget: double-buffered tiles + scratch, with headroom --------
    in_b = jnp.dtype(query.dtype).itemsize
    out_b = jnp.dtype(query.dtype).itemsize
    est = (2 * (tq * D * in_b + 2 * tk * D * in_b + tq * D * out_b)  # q/k/v/out
           + 2 * tk * 4                                              # bias
           + tq * D * 2 + 2 * tq * 4 + tq * D * 4)                   # qs/m/l/acc
    vmem_limit = int(min(64 * 2**20, max(32 * 2**20, 1.5 * est)))

    kernel = functools.partial(_flash_sdpa_kernel,
                               scale=scale, apply_bias=apply_bias)

    out_p = pl.pallas_call(
        kernel,
        out_shape=jax.ShapeDtypeStruct((B, Lq_p, D), query.dtype),
        grid_spec=pltpu.PrefetchScalarGridSpec(
            num_scalar_prefetch=0,
            grid=grid,
            in_specs=[
                # batch dim squeezed out of the kernel refs -> clean 2D matmuls
                pl.BlockSpec((None, tq, D), lambda b, i, j: (b, i, 0)),
                pl.BlockSpec((None, tk, D), lambda b, i, j: (b, j, 0)),
                pl.BlockSpec((None, tk, D), lambda b, i, j: (b, j, 0)),
                pl.BlockSpec((1, tk), lambda b, i, j: (0, j)),
            ],
            out_specs=pl.BlockSpec((None, tq, D), lambda b, i, j: (b, i, 0)),
            scratch_shapes=[
                pltpu.VMEM((tq, D), jnp.bfloat16),   # scaled q (staged per q tile)
                pltpu.VMEM((tq, 1), jnp.float32),    # running max m
                pltpu.VMEM((tq, 1), jnp.float32),    # running sum l
                pltpu.VMEM((tq, D), jnp.float32),    # f32 PV accumulator
            ]),
        compiler_params=pltpu.CompilerParams(
            dimension_semantics=("parallel", "parallel", "arbitrary"),
            vmem_limit_bytes=vmem_limit),
    )(qp, kp, vp, bias)

    return out_p if Lq_p == Lq else out_p[:, :Lq, :]


def _reference(query, key, value):
    scale = key.shape[-1] ** (-0.5)
    qk = jnp.einsum('bqd,bkd->bqk', query.astype(jnp.float32),
                    key.astype(jnp.float32)) * scale
    probs = jax.nn.softmax(qk, axis=-1)
    return jnp.einsum('bqk,bkd->bqd', probs, value.astype(jnp.float32))


if __name__ == "__main__":
    rng = jax.random.PRNGKey(0)
    kq, kk, kv, kq2, kk2, kv2 = jax.random.split(rng, 6)

    # --- shapes from the PyTorch module's example tensors -------------------
    query = jax.random.normal(kq, (1, 1, 64), dtype=jnp.float32)
    key = jax.random.normal(kk, (1, 10, 64), dtype=jnp.float32)
    value = jax.random.normal(kv, (1, 10, 64), dtype=jnp.float32)
    mask = jnp.ones((1, 1, 10), dtype=jnp.float32)  # unused by forward

    out = jax.block_until_ready(
        scaled_dot_product_attention(query, key, value, mask))
    ref = _reference(query, key, value)
    assert out.shape == (1, 1, 64)
    # bf16 MXU operands + approx reciprocal: not bit-exact vs the f32 reference
    assert jnp.allclose(out, ref, atol=3e-2, rtol=2e-2), \
        float(jnp.max(jnp.abs(out - ref)))

    # --- a second, multi-tile case to exercise online softmax / padding -----
    q2 = jax.random.normal(kq2, (2, 130, 64), dtype=jnp.float32)
    k2 = jax.random.normal(kk2, (2, 300, 64), dtype=jnp.float32)
    v2 = jax.random.normal(kv2, (2, 300, 64), dtype=jnp.float32)
    out2 = jax.block_until_ready(
        scaled_dot_product_attention(q2, k2, v2, None, block_q=64, block_k=128))
    ref2 = _reference(q2, k2, v2)
    assert out2.shape == (2, 130, 64)
    assert jnp.allclose(out2, ref2, atol=3e-2, rtol=2e-2), \
        float(jnp.max(jnp.abs(out2 - ref2)))

    print("KERNEL_OK")
</pallas_src>

<mosaic_0001>
module attributes {stable_mosaic.version = 11 : i64} {
  func.func @_flash_sdpa_kernel(%arg0: i32, %arg1: i32, %arg2: i32, %arg3: memref<1x8x64xf32, #tpu.memory_space<vmem>>, %arg4: memref<1x16x64xf32, #tpu.memory_space<vmem>>, %arg5: memref<1x16x64xf32, #tpu.memory_space<vmem>>, %arg6: memref<1x16xf32, #tpu.memory_space<vmem>>, %arg7: memref<1x8x64xf32, #tpu.memory_space<vmem>>, %arg8: memref<8x64xbf16, #tpu.memory_space<vmem>>, %arg9: memref<8x1xf32, #tpu.memory_space<vmem>>, %arg10: memref<8x1xf32, #tpu.memory_space<vmem>>, %arg11: memref<8x64xf32, #tpu.memory_space<vmem>>) attributes {dimension_semantics = [#tpu.dimension_semantics<parallel>, #tpu.dimension_semantics<parallel>, #tpu.dimension_semantics<arbitrary>], iteration_bounds = array<i64: 1, 1, 1>, scalar_prefetch = 0 : i64, scratch_operands = 4 : i64, tpu.core_type = #tpu.core_type<tc>, window_params = [{transform_indices = @transform_0, window_bounds = array<i64: 1, 8, 64>}, {transform_indices = @transform_1, window_bounds = array<i64: 1, 16, 64>}, {transform_indices = @transform_2, window_bounds = array<i64: 1, 16, 64>}, {transform_indices = @transform_3, window_bounds = array<i64: 1, 16>}, {transform_indices = @transform_4, window_bounds = array<i64: 1, 8, 64>}]} {
    %c0_i32 = arith.constant 0 : i32
    %0 = arith.cmpi eq, %arg2, %c0_i32 : i32
    %1 = arith.extui %0 : i1 to i32
    %c0_i32_0 = arith.constant 0 : i32
    %2 = arith.cmpi ne, %1, %c0_i32_0 : i32
    scf.if %2 {
      %c0_27 = arith.constant 0 : index
      %c0_28 = arith.constant 0 : index
      %c0_29 = arith.constant 0 : index
      %40 = vector.load %arg3[%c0_27, %c0_28, %c0_29] : memref<1x8x64xf32, #tpu.memory_space<vmem>>, vector<1x8x64xf32>
      %41 = vector.shape_cast %40 : vector<1x8x64xf32> to vector<8x64xf32>
      %cst_30 = arith.constant 1.250000e-01 : f32
      %42 = vector.broadcast %cst_30 : f32 to vector<8x64xf32>
      %43 = arith.mulf %41, %42 : vector<8x64xf32>
      %44 = arith.truncf %43 : vector<8x64xf32> to vector<8x64xbf16>
      %c0_31 = arith.constant 0 : index
      %c0_32 = arith.constant 0 : index
      %45 = vector.load %arg8[%c0_31, %c0_32] : memref<8x64xbf16, #tpu.memory_space<vmem>>, vector<8x64xbf16>
      tpu.vector_store %arg8[%c0_31, %c0_32], %44 {strides = array<i32>} : memref<8x64xbf16, #tpu.memory_space<vmem>>, vector<8x64xbf16>,
      %cst_33 = arith.constant -2.38197633E+38 : f32
      %46 = vector.broadcast %cst_33 : f32 to vector<8x1xf32>
      %c0_34 = arith.constant 0 : index
      %c0_35 = arith.constant 0 : index
      %47 = vector.load %arg9[%c0_34, %c0_35] : memref<8x1xf32, #tpu.memory_space<vmem>>, vector<8x1xf32>
      tpu.vector_store %arg9[%c0_34, %c0_35], %46 {strides = array<i32>} : memref<8x1xf32, #tpu.memory_space<vmem>>, vector<8x1xf32>,
      %cst_36 = arith.constant 0.000000e+00 : f32
      %48 = vector.broadcast %cst_36 : f32 to vector<8x1xf32>
      %c0_37 = arith.constant 0 : index
      %c0_38 = arith.constant 0 : index
      %49 = vector.load %arg10[%c0_37, %c0_38] : memref<8x1xf32, #tpu.memory_space<vmem>>, vector<8x1xf32>
      tpu.vector_store %arg10[%c0_37, %c0_38], %48 {strides = array<i32>} : memref<8x1xf32, #tpu.memory_space<vmem>>, vector<8x1xf32>,
      %cst_39 = arith.constant 0.000000e+00 : f32
      %50 = vector.broadcast %cst_39 : f32 to vector<8x64xf32>
      %c0_40 = arith.constant 0 : index
      %c0_41 = arith.constant 0 : index
      %51 = vector.load %arg11[%c0_40, %c0_41] : memref<8x64xf32, #tpu.memory_space<vmem>>, vector<8x64xf32>
      tpu.vector_store %arg11[%c0_40, %c0_41], %50 {strides = array<i32>} : memref<8x64xf32, #tpu.memory_space<vmem>>, vector<8x64xf32>,
    } else {
    }
    %c0 = arith.constant 0 : index
    %c0_1 = arith.constant 0 : index
    %3 = vector.load %arg8[%c0, %c0_1] : memref<8x64xbf16, #tpu.memory_space<vmem>>, vector<8x64xbf16>
    %c0_2 = arith.constant 0 : index
    %c0_3 = arith.constant 0 : index
    %c0_4 = arith.constant 0 : index
    %4 = vector.load %arg4[%c0_2, %c0_3, %c0_4] : memref<1x16x64xf32, #tpu.memory_space<vmem>>, vector<1x16x64xf32>
    %5 = vector.shape_cast %4 : vector<1x16x64xf32> to vector<16x64xf32>
    %6 = arith.truncf %5 : vector<16x64xf32> to vector<16x64xbf16>
    %cst = arith.constant dense<0.000000e+00> : vector<8x16xf32>
    %7 = tpu.matmul %3, %6, %cst {dimension_numbers = #tpu.dot_dimension_numbers<[1], [1], [0], [0], [0, 0, 1, 0], [], []>} : vector<8x64xbf16>, vector<16x64xbf16>, vector<8x16xf32> -> vector<8x16xf32>
    %c0_5 = arith.constant 0 : index
    %c0_6 = arith.constant 0 : index
    %8 = vector.load %arg6[%c0_5, %c0_6] : memref<1x16xf32, #tpu.memory_space<vmem>>, vector<1x16xf32>
    %9 = vector.broadcast %8 : vector<1x16xf32> to vector<8x16xf32>
    %10 = arith.addf %7, %9 : vector<8x16xf32>
    %c0_7 = arith.constant 0 : index
    %c0_8 = arith.constant 0 : index
    %11 = vector.load %arg9[%c0_7, %c0_8] : memref<8x1xf32, #tpu.memory_space<vmem>>, vector<8x1xf32>
    %cst_9 = arith.constant dense<0xFF800000> : vector<8xf32>
    %12 = vector.multi_reduction <maximumf>, %10, %cst_9 [1] : vector<8x16xf32> to vector<8xf32>
    %13 = vector.shape_cast %12 : vector<8xf32> to vector<8x1xf32>
    %14 = arith.maximumf %11, %13 : vector<8x1xf32>
    %15 = arith.subf %11, %14 : vector<8x1xf32>
    %16 = math.exp %15 : vector<8x1xf32>
    %17 = vector.broadcast %14 : vector<8x1xf32> to vector<8x16xf32>
    %18 = arith.subf %10, %17 : vector<8x16xf32>
    %19 = math.exp %18 : vector<8x16xf32>
    %c0_10 = arith.constant 0 : index
    %c0_11 = arith.constant 0 : index
    %20 = vector.load %arg10[%c0_10, %c0_11] : memref<8x1xf32, #tpu.memory_space<vmem>>, vector<8x1xf32>
    %21 = arith.mulf %16, %20 : vector<8x1xf32>
    %cst_12 = arith.constant dense<0.000000e+00> : vector<8xf32>
    %22 = vector.multi_reduction <add>, %19, %cst_12 [1] : vector<8x16xf32> to vector<8xf32>
    %23 = vector.shape_cast %22 : vector<8xf32> to vector<8x1xf32>
    %24 = arith.addf %21, %23 : vector<8x1xf32>
    %c0_13 = arith.constant 0 : index
    %c0_14 = arith.constant 0 : index
    %25 = vector.load %arg10[%c0_13, %c0_14] : memref<8x1xf32, #tpu.memory_space<vmem>>, vector<8x1xf32>
    tpu.vector_store %arg10[%c0_13, %c0_14], %24 {strides = array<i32>} : memref<8x1xf32, #tpu.memory_space<vmem>>, vector<8x1xf32>,
    %c0_15 = arith.constant 0 : index
    %c0_16 = arith.constant 0 : index
    %26 = vector.load %arg11[%c0_15, %c0_16] : memref<8x64xf32, #tpu.memory_space<vmem>>, vector<8x64xf32>
    %27 = vector.broadcast %16 : vector<8x1xf32> to vector<8x64xf32>
    %28 = arith.mulf %27, %26 : vector<8x64xf32>
    %29 = arith.truncf %19 : vector<8x16xf32> to vector<8x16xbf16>
    %c0_17 = arith.constant 0 : index
    %c0_18 = arith.constant 0 : index
    %c0_19 = arith.constant 0 : index
    %30 = vector.load %arg5[%c0_17, %c0_18, %c0_19] : memref<1x16x64xf32, #tpu.memory_space<vmem>>, vector<1x16x64xf32>
    %31 = vector.shape_cast %30 : vector<1x16x64xf32> to vector<16x64xf32>
    %32 = arith.truncf %31 : vector<16x64xf32> to vector<16x64xbf16>
    %cst_20 = arith.constant dense<0.000000e+00> : vector<8x64xf32>
    %33 = tpu.matmul %29, %32, %cst_20 {dimension_numbers = #tpu.dot_dimension_numbers<[1], [0], [0], [1], [0, 0, 1, 1], [], []>} : vector<8x16xbf16>, vector<16x64xbf16>, vector<8x64xf32> -> vector<8x64xf32>
    %34 = arith.addf %28, %33 : vector<8x64xf32>
    %c0_21 = arith.constant 0 : index
    %c0_22 = arith.constant 0 : index
    %35 = vector.load %arg11[%c0_21, %c0_22] : memref<8x64xf32, #tpu.memory_space<vmem>>, vector<8x64xf32>
    tpu.vector_store %arg11[%c0_21, %c0_22], %34 {strides = array<i32>} : memref<8x64xf32, #tpu.memory_space<vmem>>, vector<8x64xf32>,
    %c0_23 = arith.constant 0 : index
    %c0_24 = arith.constant 0 : index
    %36 = vector.load %arg9[%c0_23, %c0_24] : memref<8x1xf32, #tpu.memory_space<vmem>>, vector<8x1xf32>
    tpu.vector_store %arg9[%c0_23, %c0_24], %14 {strides = array<i32>} : memref<8x1xf32, #tpu.memory_space<vmem>>, vector<8x1xf32>,
    %c0_i32_25 = arith.constant 0 : i32
    %37 = arith.cmpi eq, %arg2, %c0_i32_25 : i32
    %38 = arith.extui %37 : i1 to i32
    %c0_i32_26 = arith.constant 0 : i32
    %39 = arith.cmpi ne, %38, %c0_i32_26 : i32
    scf.if %39 {
      %c0_27 = arith.constant 0 : index
      %c0_28 = arith.constant 0 : index
      %40 = vector.load %arg10[%c0_27, %c0_28] : memref<8x1xf32, #tpu.memory_space<vmem>>, vector<8x1xf32>
      %41 = tpu.reciprocal %40 {approx = true} : vector<8x1xf32> -> vector<8x1xf32>
      %c0_29 = arith.constant 0 : index
      %c0_30 = arith.constant 0 : index
      %42 = vector.load %arg11[%c0_29, %c0_30] : memref<8x64xf32, #tpu.memory_space<vmem>>, vector<8x64xf32>
      %43 = vector.broadcast %41 : vector<8x1xf32> to vector<8x64xf32>
      %44 = arith.mulf %42, %43 : vector<8x64xf32>
      %c0_31 = arith.constant 0 : index
      %c0_32 = arith.constant 0 : index
      %c0_33 = arith.constant 0 : index
      %45 = vector.load %arg7[%c0_31, %c0_32, %c0_33] : memref<1x8x64xf32, #tpu.memory_space<vmem>>, vector<1x8x64xf32>
      %46 = vector.shape_cast %45 : vector<1x8x64xf32> to vector<8x64xf32>
      %47 = vector.shape_cast %44 : vector<8x64xf32> to vector<1x8x64xf32>
      tpu.vector_store %arg7[%c0_31, %c0_32, %c0_33], %47 {strides = array<i32>} : memref<1x8x64xf32, #tpu.memory_space<vmem>>, vector<1x8x64xf32>,
    } else {
    }
    return
  }
  func.func @transform_0(%arg0: i32, %arg1: i32, %arg2: i32) -> (i32, i32, i32) {
    %c0_i32 = arith.constant 0 : i32
    %c0_i32_0 = arith.constant 0 : i32
    return %arg0, %arg1, %c0_i32 : i32, i32, i32
  }
  func.func @transform_1(%arg0: i32, %arg1: i32, %arg2: i32) -> (i32, i32, i32) {
    %c0_i32 = arith.constant 0 : i32
    %c0_i32_0 = arith.constant 0 : i32
    return %arg0, %arg2, %c0_i32 : i32, i32, i32
  }
  func.func @transform_2(%arg0: i32, %arg1: i32, %arg2: i32) -> (i32, i32, i32) {
    %c0_i32 = arith.constant 0 : i32
    %c0_i32_0 = arith.constant 0 : i32
    return %arg0, %arg2, %c0_i32 : i32, i32, i32
  }
  func.func @transform_3(%arg0: i32, %arg1: i32, %arg2: i32) -> (i32, i32) {
    %c0_i32 = arith.constant 0 : i32
    %c0_i32_0 = arith.constant 0 : i32
    return %c0_i32, %arg2 : i32, i32
  }
  func.func @transform_4(%arg0: i32, %arg1: i32, %arg2: i32) -> (i32, i32, i32) {
    %c0_i32 = arith.constant 0 : i32
    %c0_i32_0 = arith.constant 0 : i32
    return %arg0, %arg1, %c0_i32 : i32, i32, i32
  }
}

</mosaic_0001>

<llo_original>
// kernel: tpu_custom_call.1
$region0: #{tpu_custom_call.1}
  #allocation0 [shape = 'u32[]', space=smem, size = 0x4, offset = 0x4, fixed_abs, tag = 'smem constant byte address 0x4 - core index']
  #allocation1 [shape = 'u32[144,128]{1,0:T(1,128)}', space=vmem, size = 0x12000, scoped, tag = 'internal scratch']
  #allocation2 [shape = 'bf16[8,64]{1,0:T(8,128)(2,1)}', space=vmem, size = 0x800, scoped, tag = 'scratch operand']
  #allocation3 [shape = 'f32[8,1]{1,0:T(8,128)}', space=vmem, size = 0x1000, scoped, tag = 'scratch operand']
  #allocation4 [shape = 'f32[8,1]{1,0:T(8,128)}', space=vmem, size = 0x1000, scoped, tag = 'scratch operand']
  #allocation5 [shape = 'f32[8,64]{1,0:T(8,128)}', space=vmem, size = 0x1000, scoped, tag = 'scratch operand']
  %s0 = inlined_call_operand.hbm [shape: f32[1,8,64], index: 0, kind: input, shape index: {}]
  %s1 = inlined_call_operand.hbm [shape: f32[1,16,64], index: 1, kind: input, shape index: {}]
  %s2 = inlined_call_operand.hbm [shape: f32[1,16,64], index: 2, kind: input, shape index: {}]
  %s3 = inlined_call_operand.vmem [shape: f32[1,16], index: 3, kind: input, shape index: {}]
  %s4 = inlined_call_operand.hbm [shape: f32[1,8,64], index: 4, kind: output, shape index: {}]
  %s5 = sld [smem:[#allocation0]]
  $region46: #{tpu_custom_call.1} parent=0
    _
  %s7 = ssub.s32 1, %s5
  %s8 = scalar_select 0, %s7, %s5
  $region1: #{tpu_custom_call.1} parent=0
    #allocation6 [shape = 'u8[4096]{0}', space=vmem, size = 0x1000, scoped, tag = 'input window, operand 0, single buffered']
    #allocation7 [shape = 's32[1]{0}', space=sflag, size = 0x4, scoped, tag = 'scoped memory for tpu_custom_call.1']
    #allocation8 [shape = 's32[1]{0}', space=sflag, size = 0x4, scoped, tag = 'scoped memory for tpu_custom_call.1']
    #allocation9 [shape = 'u8[8192]{0}', space=vmem, size = 0x2000, scoped, tag = 'input window, operand 1, single buffered']
    #allocation10 [shape = 's32[1]{0}', space=sflag, size = 0x4, scoped, tag = 'scoped memory for tpu_custom_call.1']
    #allocation11 [shape = 'u8[8192]{0}', space=vmem, size = 0x2000, scoped, tag = 'input window, operand 2, single buffered']
    #allocation12 [shape = 'u8[4096]{0}', space=vmem, size = 0x1000, scoped, tag = 'output window, operand 0, single buffered']
    %9 = vsyncpa [#allocation7], 0
    %10 = vsyncpa [#allocation10], 0
    %11 = vsyncpa [#allocation8], 0
    // Predicated region
    $region2: #{tpu_custom_call.1} parent=1 // pred_check
      _
    $region3: #{tpu_custom_call.1} parent=1 // pred_check_branch
      %13 = sbr.rel (0) target = $region5
    $region4: #{tpu_custom_call.1} parent=1 // pred_region
      %s15 = ssub.s32 128, 128
      %16 = vsyncadd [#allocation7], %s15
      %s18 = sshll.u32 [#allocation6], 4
      %s19 = int_to_ptr.vmem [resolvable:$true] %s18
      %21 = dma.hbm_to_vmem [thread:$0]  %s0, 128, %s19, [#allocation7]
    $region5: #{tpu_custom_call.1} parent=1 // pred_fallthru
      _
    // Predicated region
    $region6: #{tpu_custom_call.1} parent=1 // pred_check
      _
    $region7: #{tpu_custom_call.1} parent=1 // pred_check_branch
      %23 = sbr.rel (0) target = $region9
    $region8: #{tpu_custom_call.1} parent=1 // pred_region
      %s25 = ssub.s32 256, 256
      %26 = vsyncadd [#allocation10], %s25
      %s27 = sshll.u32 [#allocation9], 4
      %s28 = int_to_ptr.vmem [resolvable:$true] %s27
      %33 = dma.hbm_to_vmem [thread:$0]  %s1, 256, %s28, [#allocation10], 128, 128, 8
    $region9: #{tpu_custom_call.1} parent=1 // pred_fallthru
      _
    // Predicated region
    $region10: #{tpu_custom_call.1} parent=1 // pred_check
      _
    $region11: #{tpu_custom_call.1} parent=1 // pred_check_branch
      %35 = sbr.rel (0) target = $region13
    $region12: #{tpu_custom_call.1} parent=1 // pred_region
      %s37 = ssub.s32 256, 256
      %38 = vsyncadd [#allocation10], %s37
      %s39 = sshll.u32 [#allocation11], 4
      %s40 = int_to_ptr.vmem [resolvable:$true] %s39
      %45 = dma.hbm_to_vmem [thread:$0]  %s2, 256, %s40, [#allocation10], 128, 128, 8
    $region13: #{tpu_custom_call.1} parent=1 // pred_fallthru
      _
    // Predicated region
    $region14: #{tpu_custom_call.1} parent=1 // pred_check
      _
    $region15: #{tpu_custom_call.1} parent=1 // pred_check_branch
      %47 = sbr.rel (0) target = $region17
    $region16: #{tpu_custom_call.1} parent=1 // pred_region
      _
    $region17: #{tpu_custom_call.1} parent=1 // pred_fallthru
      _
    // Predicated region
    $region18: #{tpu_custom_call.1} parent=1 // pred_check
      _
    $region19: #{tpu_custom_call.1} parent=1 // pred_check_branch
      %49 = sbr.rel (0) target = $region21
    $region20: #{tpu_custom_call.1} parent=1 // pred_region
      %50 = dma.done [#allocation7], 128
    $region21: #{tpu_custom_call.1} parent=1 // pred_fallthru
      _
    // Predicated region
    $region22: #{tpu_custom_call.1} parent=1 // pred_check
      _
    $region23: #{tpu_custom_call.1} parent=1 // pred_check_branch
      %52 = sbr.rel (0) target = $region25
    $region24: #{tpu_custom_call.1} parent=1 // pred_region
      %53 = dma.done [#allocation10], 256
    $region25: #{tpu_custom_call.1} parent=1 // pred_fallthru
      _
    // Predicated region
    $region26: #{tpu_custom_call.1} parent=1 // pred_check
      _
    $region27: #{tpu_custom_call.1} parent=1 // pred_check_branch
      %55 = sbr.rel (0) target = $region29
    $region28: #{tpu_custom_call.1} parent=1 // pred_region
      %56 = dma.done [#allocation10], 256
    $region29: #{tpu_custom_call.1} parent=1 // pred_fallthru
      _
    %p58 = scmp.eq.s32.totalorder 0, 0
    // Predicated region
    $region30: #{tpu_custom_call.1} parent=1 // pred_check
      %p59 = pneg %p58
    $region31: #{tpu_custom_call.1} parent=1 // pred_check_branch
      %61 = sbr.rel (%p59) target = $region33
    $region32: #{tpu_custom_call.1} parent=1 // pred_region
      %v62 = vld [vmem:[#allocation6] sm:$0xff]
      %v63 = vmul.f32 %v62, 0.125
      %v64 = vpack.c.bf16 %v63, %v63
      %vm65 = vcmask 519168
      %66 = vst.msk [vmem:[#allocation2] sm:$0xf] %vm65, %v64
      %vm67 = vcmask 7168
      %68 = vst.msk [vmem:[#allocation3] sm:$0xff] %vm67, -2.3819763e+38
      %69 = vst.msk [vmem:[#allocation4] sm:$0xff] %vm67, 0.0
      %vm70 = vcmask 523264
      %71 = vst.msk [vmem:[#allocation5] sm:$0xff] %vm70, 0.0
    $region33: #{tpu_custom_call.1} parent=1 // pred_fallthru
      _
    %v72 = vld [vmem:[#allocation2] sm:$0xf]
    %v73 = vld [vmem:[#allocation9] sm:$0xff]
    %v74 = vld [vmem:[#allocation9 + $0x8] sm:$0xff]
    %v75 = vpack.c.bf16 %v74, %v73
    %v76 = vld [vmem:[%s3] sm:$0x1]
    %v78 = vlaneseq
    %v79 = vshrl.u32 %v78, 7
    %v80 = vsub.s32 0, %v79
    %v81 = vrot.slane %v76, %v80
    %vm83 = vcmask 523264
    %v85 = vsel %vm83, %v72, 0
    %v88 = vsel %vm83, %v75, 0
    %90 = vmatprep.subr.bf16.mxu0 0
    %91 = vmatpush1.bf16.xpose.msra.mxu0 %v88
    %92 = vmatprep.subr.bf16.mxu0 0
    %93 = vmatpush1.bf16.xpose.msra.mxu0 0
    %94 = vmatprep.subr.bf16.mxu0 0
    %95 = vmatpush1.bf16.xpose.msra.mxu0 0
    %96 = vmatprep.subr.bf16.mxu0 0
    %97 = vmatpush1.bf16.xpose.msra.mxu0 0
    %98 = vmatprep.subr.bf16.mxu0 0
    %99 = vmatpush1.bf16.xpose.msra.mxu0 0
    %100 = vmatprep.subr.bf16.mxu0 0
    %101 = vmatpush1.bf16.xpose.msra.mxu0 0
    %102 = vmatprep.subr.bf16.mxu0 0
    %103 = vmatpush1.bf16.xpose.msra.mxu0 0
    %104 = vmatprep.subr.bf16.mxu0 0
    %105 = vmatpush1.bf16.xpose.msra.mxu0 0
    %106 = vmatprep.subr.bf16.mxu0 0
    %107 = vmatpush1.bf16.xpose.msra.mxu0 0
    %108 = vmatprep.subr.bf16.mxu0 0
    %109 = vmatpush1.bf16.xpose.msra.mxu0 0
    %110 = vmatprep.subr.bf16.mxu0 0
    %111 = vmatpush1.bf16.xpose.msra.mxu0 0
    %112 = vmatprep.subr.bf16.mxu0 0
    %113 = vmatpush1.bf16.xpose.msra.mxu0 0
    %114 = vmatprep.subr.bf16.mxu0 0
    %115 = vmatpush1.bf16.xpose.msra.mxu0 0
    %116 = vmatprep.subr.bf16.mxu0 0
    %117 = vmatpush1.bf16.xpose.msra.mxu0 0
    %118 = vmatprep.subr.bf16.mxu0 0
    %119 = vmatpush1.bf16.xpose.msra.mxu0 0
    %120 = vmatprep.subr.bf16.mxu0 0
    %121 = vmatpush1.bf16.xpose.msra.mxu0 0
    %122 = vmatprep.mubr.bf16.mxu0 0
    %123 = vmatmul.mubr.bf16.gmra.mrb[0].mxu0 %v85
    %v124 = vpop.f32.mrb[0].mxu0
    %v125 = vadd.f32 %v81, %v124
    %v126 = vpop.f32.mrb[0].mxu0
    %v127 = vpop.f32.mrb[0].mxu0
    %v128 = vpop.f32.mrb[0].mxu0
    %129 = vdwg.mxu0
    %v130 = vld [vmem:[#allocation3] sm:$0xff]
    %vm131 = vcmask 130048
    %v132 = vsel %vm131, %v125, -inf
    %133 = vmax.xlane.f32.xlu0 %v132
    %v134 = vpop.xlane.xlu0 %133
    %v135 = vmax.f32 %v130, %v134
    %v136 = vsub.f32 %v130, %v135
    %v137 = vmul.f32 %v136, 1.442695
    %v138 = vpow.pop %v137
    %140 = vset.pattern.permute.xlu0 0
    %141 = vperm.xlu0 %140, %v135
    %v142 = vpop.permute.xlu0 %141
    %v144 = vsub.f32 %v125, %v142
    %v145 = vmul.f32 %v144, 1.442695
    %v146 = vpow.pop %v145
    %v147 = vld [vmem:[#allocation4] sm:$0xff]
    %v148 = vmul.f32 %v138, %v147
    %v149 = vsel %vm131, %v146, 0.0
    %150 = vadd.xlane.f32.xlu0 %v149
    %v151 = vpop.xlane.xlu0 %150
    %v152 = vadd.f32 %v148, %v151
    %vm153 = vcmask 7168
    %154 = vst.msk [vmem:[#allocation4] sm:$0xff] %vm153, %v152
    %v155 = vld [vmem:[#allocation5] sm:$0xff]
    %157 = vset.pattern.permute.xlu0 0
    %158 = vperm.xlu0 %157, %v138
    %v159 = vpop.permute.xlu0 %158
    %v161 = vmul.f32 %v159, %v155
    %v162 = vpack.c.bf16 %v146, %v146
    %v163 = vld [vmem:[#allocation11] sm:$0xff]
    %v164 = vld [vmem:[#allocation11 + $0x8] sm:$0xff]
    %v165 = vpack.c.bf16 %v164, %v163
    %v167 = vsel %vm131, %v162, 0
    %169 = vmatprep.subr.bf16.mxu0 0
    %170 = vmatpush1.bf16.msra.mxu0 %v165
    %171 = vmatprep.subr.bf16.mxu0 0
    %172 = vmatpush1.bf16.msra.mxu0 0
    %173 = vmatprep.subr.bf16.mxu0 0
    %174 = vmatpush1.bf16.msra.mxu0 0
    %175 = vmatprep.subr.bf16.mxu0 0
    %176 = vmatpush1.bf16.msra.mxu0 0
    %177 = vmatprep.subr.bf16.mxu0 0
    %178 = vmatpush1.bf16.msra.mxu0 0
    %179 = vmatprep.subr.bf16.mxu0 0
    %180 = vmatpush1.bf16.msra.mxu0 0
    %181 = vmatprep.subr.bf16.mxu0 0
    %182 = vmatpush1.bf16.msra.mxu0 0
    %183 = vmatprep.subr.bf16.mxu0 0
    %184 = vmatpush1.bf16.msra.mxu0 0
    %185 = vmatprep.subr.bf16.mxu0 0
    %186 = vmatpush1.bf16.msra.mxu0 0
    %187 = vmatprep.subr.bf16.mxu0 0
    %188 = vmatpush1.bf16.msra.mxu0 0
    %189 = vmatprep.subr.bf16.mxu0 0
    %190 = vmatpush1.bf16.msra.mxu0 0
    %191 = vmatprep.subr.bf16.mxu0 0
    %192 = vmatpush1.bf16.msra.mxu0 0
    %193 = vmatprep.subr.bf16.mxu0 0
    %194 = vmatpush1.bf16.msra.mxu0 0
    %195 = vmatprep.subr.bf16.mxu0 0
    %196 = vmatpush1.bf16.msra.mxu0 0
    %197 = vmatprep.subr.bf16.mxu0 0
    %198 = vmatpush1.bf16.msra.mxu0 0
    %199 = vmatprep.subr.bf16.mxu0 0
    %200 = vmatpush1.bf16.msra.mxu0 0
    %201 = vmatprep.mubr.bf16.mxu0 0
    %202 = vmatmul.mubr.bf16.gmra.mrb[0].mxu0 %v167
    %v203 = vpop.f32.mrb[0].mxu0
    %v204 = vadd.f32 0.0, %v203
    %v205 = vpop.f32.mrb[0].mxu0
    %v206 = vpop.f32.mrb[0].mxu0
    %v207 = vpop.f32.mrb[0].mxu0
    %208 = vdwg.mxu0
    %v209 = vadd.f32 %v161, %v204
    %210 = vst.msk [vmem:[#allocation5] sm:$0xff] %vm83, %v209
    %211 = vst.msk [vmem:[#allocation3] sm:$0xff] %vm153, %v135
    // Predicated region
    $region34: #{tpu_custom_call.1} parent=1 // pred_check
      %p212 = pneg %p58
    $region35: #{tpu_custom_call.1} parent=1 // pred_check_branch
      %214 = sbr.rel (%p212) target = $region37
    $region36: #{tpu_custom_call.1} parent=1 // pred_region
      %v215 = vld [vmem:[#allocation4] sm:$0xff]
      %v216 = vrcp.pop %v215
      %v217 = vld [vmem:[#allocation5] sm:$0xff]
      %219 = vset.pattern.permute.xlu0 0
      %220 = vperm.xlu0 %219, %v216
      %v221 = vpop.permute.xlu0 %220
      %v223 = vmul.f32 %v217, %v221
      %224 = vst.msk [vmem:[#allocation12] sm:$0xff] %vm83, %v223
    $region37: #{tpu_custom_call.1} parent=1 // pred_fallthru
      _
    // Predicated region
    $region38: #{tpu_custom_call.1} parent=1 // pred_check
      _
    $region39: #{tpu_custom_call.1} parent=1 // pred_check_branch
      %226 = sbr.rel (0) target = $region41
    $region40: #{tpu_custom_call.1} parent=1 // pred_region
      %s228 = ssub.s32 128, 128
      %229 = vsyncadd [#allocation8], %s228
      %s231 = sshll.u32 [#allocation12], 4
      %s232 = int_to_ptr.vmem [resolvable:$true] %s231
      %234 = dma.vmem_to_hbm [thread:$0]  %s232, 128, %s4, [#allocation8]
    $region41: #{tpu_custom_call.1} parent=1 // pred_fallthru
      _
    // Predicated region
    $region42: #{tpu_custom_call.1} parent=1 // pred_check
      _
    $region43: #{tpu_custom_call.1} parent=1 // pred_check_branch
      %236 = sbr.rel (0) target = $region45
    $region44: #{tpu_custom_call.1} parent=1 // pred_region
      %237 = dma.done [#allocation8], 128
    $region45: #{tpu_custom_call.1} parent=1 // pred_fallthru
      _
    %238 = vsyncpa [#allocation7], 1
    %239 = vsyncpa [#allocation10], 1
    %240 = vsyncpa [#allocation8], 1

</llo_original>
